<compile_context>
chip_gen: v5e
topology: v5e:2x2
jax: 0.10.0
libtpu: 0.0.40
codegen_flags: <defaults>
</compile_context>

<pallas_src>
import functools

import jax
import jax.numpy as jnp
from jax.experimental import pallas as pl
from jax.experimental.pallas import tpu as pltpu


def _round_up(n, m):
    return ((n + m - 1) // m) * m


def _num_tensorcores():
    """Best-effort TensorCore count per chip (2 on v7x, 1 on v5e/v6e)."""
    try:
        d = jax.devices()[0]
        n = int(getattr(d, "num_cores", 1))
    except Exception:  # pragma: no cover - defensive
        n = 1
    return max(1, min(n, 2))


def _mlp_kernel(xT_ref, w1_ref, b1_ref, w2_ref, b2_ref, o_ref):
    """sigmoid(relu(W1 @ x.T + b1) . w2 + b2), batch on the 128-lane axis.

    xT_ref : (Din, Bt)  VMEM  x transposed -> lane-dense batch
    w1_ref : (H, Din)   VMEM  PyTorch Linear layout (resident)
    b1_ref : (H, 1)     VMEM  column bias (broadcast over lanes)
    w2_ref : (H, 1)     VMEM  second-layer weights as a column (Dout == 1)
    b2_ref : (Dout,)    SMEM  scalar bias
    o_ref  : (Dout, Bt) VMEM  lane-dense output
    """
    # (H, Din) x (Din, Bt) -> (H, Bt): batch stays on lanes, f32 accumulate.
    h = jax.lax.dot_general(
        w1_ref[...], xT_ref[...], (((1,), (0,)), ((), ())),
        preferred_element_type=jnp.float32)
    h = jnp.maximum(h + b1_ref[...], 0.0)          # bias + ReLU, fully lane-dense
    # 1-wide head: VPU multiply + sublane reduce (avoids an M=1 MXU matmul).
    y = jnp.sum(w2_ref[...] * h, axis=0, keepdims=True) + b2_ref[0]  # (1, Bt)
    o_ref[...] = jax.nn.sigmoid(y).astype(o_ref.dtype)


def model_forward(x, w1, b1, w2, b2):
    """x: (B, Din); w1: (H, Din); b1: (H,); w2: (Dout, H); b2: (Dout,).

    Weights are consumed in PyTorch nn.Linear layout.  Returns (B, Dout)
    float32 == sigmoid(relu(x @ w1.T + b1) @ w2.T + b2).
    """
    x = jnp.asarray(x, jnp.float32)
    w1 = jnp.asarray(w1, jnp.float32)
    w2 = jnp.asarray(w2, jnp.float32)
    b1 = jnp.asarray(b1, jnp.float32)
    b2 = jnp.asarray(b2, jnp.float32).reshape(-1)       # (Dout,) scalar in SMEM

    B, Din = x.shape
    H = w1.shape[0]
    Dout = w2.shape[0]
    assert Dout == 1, "network head is 1-wide (predict() thresholds one scalar)"

    b1_col = b1.reshape(H, 1)                           # (H, 1) column bias
    w2_col = w2.reshape(H, Dout)                        # (H, 1) column weights

    # ---- batch tiling ---------------------------------------------------
    # Batch maps to the 128-lane axis, so pad to a multiple of 128.  Aim for
    # one block per TensorCore (2 on v7x, 1 on v5e/v6e); cap the block at 4096
    # rows (a few hundred KiB of VMEM even double-buffered).
    ncores = _num_tensorcores()
    nblocks = max(1, min(ncores, pl.cdiv(B, 128)))
    bt = min(_round_up(pl.cdiv(max(B, 1), nblocks), 128), 4096)
    b_pad = _round_up(B, bt)

    # Feed x transposed: (Din, B) is lane-dense (8 sublanes x B lanes) -> ~16x
    # smaller x buffers and contiguous DMA rows vs. a (B, 8) block.
    xT = x.T
    if b_pad != B:
        xT = jnp.pad(xT, ((0, 0), (0, b_pad - B)))

    grid = (b_pad // bt,)

    cost = pl.CostEstimate(
        flops=2 * b_pad * H * (Din + Dout) + b_pad * (H + Dout),
        transcendentals=b_pad * Dout,
        bytes_accessed=4 * (b_pad * Din + b_pad * Dout
                            + H * Din + H + H * Dout + Dout),
    )

    out = pl.pallas_call(
        _mlp_kernel,
        out_shape=jax.ShapeDtypeStruct((Dout, b_pad), jnp.float32),
        grid=grid,
        in_specs=[
            pl.BlockSpec((Din, bt), lambda i: (0, i)),           # x batch tile
            pl.BlockSpec((H, Din), lambda i: (0, 0)),            # W1 resident
            pl.BlockSpec((H, 1), lambda i: (0, 0)),              # b1 column
            pl.BlockSpec((H, Dout), lambda i: (0, 0)),           # W2 column
            pl.BlockSpec(memory_space=pltpu.MemorySpace.SMEM),   # b2 scalar
        ],
        out_specs=pl.BlockSpec((Dout, bt), lambda i: (0, i)),    # lane-dense
        compiler_params=pltpu.CompilerParams(
            dimension_semantics=("parallel",)),
        cost_estimate=cost,
    )(xT, w1, b1_col, w2_col, b2)

    # (Dout, B_pad) lane-dense slab -> (B, Dout) expected by the caller.
    return out[:, :B].T


if __name__ == "__main__":
    key = jax.random.PRNGKey(0)
    k_x, k_w1, k_b1, k_w2, k_b2, k_x2 = jax.random.split(key, 6)

    B, Din, H, Dout = 2, 8, 32, 1   # shapes implied by the agent's tiny MLP head

    x = jax.random.normal(k_x, (B, Din), jnp.float32)
    # Deterministic "PyTorch-like" Linear init (uniform in +-1/sqrt(fan_in)).
    w1 = jax.random.uniform(k_w1, (H, Din), jnp.float32, -1.0, 1.0) / jnp.sqrt(Din)
    b1 = jax.random.uniform(k_b1, (H,), jnp.float32, -1.0, 1.0) / jnp.sqrt(Din)
    w2 = jax.random.uniform(k_w2, (Dout, H), jnp.float32, -1.0, 1.0) / jnp.sqrt(H)
    b2 = jax.random.uniform(k_b2, (Dout,), jnp.float32, -1.0, 1.0) / jnp.sqrt(H)

    def ref_fwd(xx):
        return jax.nn.sigmoid(jnp.maximum(xx @ w1.T + b1, 0.0) @ w2.T + b2)

    # Small case: matches the module's per-frame predict() call.
    out = model_forward(x, w1, b1, w2, b2)
    jax.block_until_ready(out)
    assert out.shape == (B, Dout)
    assert jnp.allclose(out, ref_fwd(x), atol=1e-5), "mismatch vs reference (small)"

    # Batched case (whole population / many frames in one launch): exercises
    # the batch grid axis, resident weights, padding and the lane-dense store.
    B2 = 600
    x2 = jax.random.normal(k_x2, (B2, Din), jnp.float32)
    out2 = model_forward(x2, w1, b1, w2, b2)
    jax.block_until_ready(out2)
    assert out2.shape == (B2, Dout)
    assert jnp.allclose(out2, ref_fwd(x2), atol=1e-5), "mismatch vs reference (batched)"

    print("KERNEL_OK")
</pallas_src>

<mosaic_0001>
module attributes {stable_mosaic.version = 11 : i64} {
  func.func @_mlp_kernel(%arg0: i32, %arg1: memref<8x128xf32, #tpu.memory_space<vmem>>, %arg2: memref<32x8xf32, #tpu.memory_space<vmem>>, %arg3: memref<32x1xf32, #tpu.memory_space<vmem>>, %arg4: memref<32x1xf32, #tpu.memory_space<vmem>>, %arg5: memref<1xf32, #tpu.memory_space<smem>>, %arg6: memref<1x128xf32, #tpu.memory_space<vmem>>) attributes {dimension_semantics = [#tpu.dimension_semantics<parallel>], iteration_bounds = array<i64: 1>, scalar_prefetch = 0 : i64, scratch_operands = 0 : i64, tpu.core_type = #tpu.core_type<tc>, window_params = [{transform_indices = @transform_0, window_bounds = array<i64: 8, 128>}, {pipeline_mode = #tpu.pipeline_mode<synchronous>, transform_indices = @transform_1, window_bounds = array<i64: 32, 8>}, {pipeline_mode = #tpu.pipeline_mode<synchronous>, transform_indices = @transform_2, window_bounds = array<i64: 32, 1>}, {pipeline_mode = #tpu.pipeline_mode<synchronous>, transform_indices = @transform_3, window_bounds = array<i64: 32, 1>}, {transform_indices = @transform_4, window_bounds = array<i64: 1>}, {transform_indices = @transform_5, window_bounds = array<i64: 1, 128>}]} {
    %c0 = arith.constant 0 : index
    %c0_0 = arith.constant 0 : index
    %0 = vector.load %arg2[%c0, %c0_0] : memref<32x8xf32, #tpu.memory_space<vmem>>, vector<32x8xf32>
    %c0_1 = arith.constant 0 : index
    %c0_2 = arith.constant 0 : index
    %1 = vector.load %arg1[%c0_1, %c0_2] : memref<8x128xf32, #tpu.memory_space<vmem>>, vector<8x128xf32>
    %cst = arith.constant dense<0.000000e+00> : vector<32x128xf32>
    %2 = tpu.matmul %0, %1, %cst {dimension_numbers = #tpu.dot_dimension_numbers<[1], [0], [0], [1], [0, 0, 1, 1], [], []>} : vector<32x8xf32>, vector<8x128xf32>, vector<32x128xf32> -> vector<32x128xf32>
    %c0_3 = arith.constant 0 : index
    %c0_4 = arith.constant 0 : index
    %3 = vector.load %arg3[%c0_3, %c0_4] : memref<32x1xf32, #tpu.memory_space<vmem>>, vector<32x1xf32>
    %4 = vector.broadcast %3 : vector<32x1xf32> to vector<32x128xf32>
    %5 = arith.addf %2, %4 : vector<32x128xf32>
    %cst_5 = arith.constant 0.000000e+00 : f32
    %6 = vector.broadcast %cst_5 : f32 to vector<32x128xf32>
    %7 = arith.maximumf %5, %6 : vector<32x128xf32>
    %c0_6 = arith.constant 0 : index
    %c0_7 = arith.constant 0 : index
    %8 = vector.load %arg4[%c0_6, %c0_7] : memref<32x1xf32, #tpu.memory_space<vmem>>, vector<32x1xf32>
    %9 = vector.broadcast %8 : vector<32x1xf32> to vector<32x128xf32>
    %10 = arith.mulf %9, %7 : vector<32x128xf32>
    %cst_8 = arith.constant dense<0.000000e+00> : vector<128xf32>
    %11 = vector.multi_reduction <add>, %10, %cst_8 [0] : vector<32x128xf32> to vector<128xf32>
    %12 = vector.shape_cast %11 : vector<128xf32> to vector<1x128xf32>
    %c0_9 = arith.constant 0 : index
    %13 = memref.load %arg5[%c0_9] : memref<1xf32, #tpu.memory_space<smem>>
    %14 = vector.broadcast %13 : f32 to vector<1x128xf32>
    %15 = arith.addf %12, %14 : vector<1x128xf32>
    %16 = arith.negf %15 : vector<1x128xf32>
    %17 = math.exp %16 : vector<1x128xf32>
    %cst_10 = arith.constant 1.000000e+00 : f32
    %18 = vector.broadcast %cst_10 : f32 to vector<1x128xf32>
    %19 = arith.addf %18, %17 : vector<1x128xf32>
    %20 = arith.divf %18, %19 : vector<1x128xf32>
    %c0_11 = arith.constant 0 : index
    %c0_12 = arith.constant 0 : index
    %21 = vector.load %arg6[%c0_11, %c0_12] : memref<1x128xf32, #tpu.memory_space<vmem>>, vector<1x128xf32>
    tpu.vector_store %arg6[%c0_11, %c0_12], %20 {strides = array<i32>} : memref<1x128xf32, #tpu.memory_space<vmem>>, vector<1x128xf32>,
    return
  }
  func.func @transform_0(%arg0: i32) -> (i32, i32) {
    %c0_i32 = arith.constant 0 : i32
    %c0_i32_0 = arith.constant 0 : i32
    return %c0_i32, %arg0 : i32, i32
  }
  func.func @transform_1(%arg0: i32) -> (i32, i32) {
    %c0_i32 = arith.constant 0 : i32
    %c0_i32_0 = arith.constant 0 : i32
    %c0_i32_1 = arith.constant 0 : i32
    return %c0_i32, %c0_i32_0 : i32, i32
  }
  func.func @transform_2(%arg0: i32) -> (i32, i32) {
    %c0_i32 = arith.constant 0 : i32
    %c0_i32_0 = arith.constant 0 : i32
    %c0_i32_1 = arith.constant 0 : i32
    return %c0_i32, %c0_i32_0 : i32, i32
  }
  func.func @transform_3(%arg0: i32) -> (i32, i32) {
    %c0_i32 = arith.constant 0 : i32
    %c0_i32_0 = arith.constant 0 : i32
    %c0_i32_1 = arith.constant 0 : i32
    return %c0_i32, %c0_i32_0 : i32, i32
  }
  func.func @transform_4(%arg0: i32) -> i32 {
    %c0_i32 = arith.constant 0 : i32
    %c0_i32_0 = arith.constant 0 : i32
    return %c0_i32 : i32
  }
  func.func @transform_5(%arg0: i32) -> (i32, i32) {
    %c0_i32 = arith.constant 0 : i32
    %c0_i32_0 = arith.constant 0 : i32
    return %c0_i32, %arg0 : i32, i32
  }
}

</mosaic_0001>

<llo_original>
// kernel: tpu_custom_call.1
$region0: #{tpu_custom_call.1}
  #allocation0 [shape = 'u32[]', space=smem, size = 0x4, offset = 0x4, fixed_abs, tag = 'smem constant byte address 0x4 - core index']
  #allocation1 [shape = 'u32[72,128]{1,0:T(1,128)}', space=vmem, size = 0x9000, scoped, tag = 'internal scratch']
  #allocation2 [shape = 'f32[1]{0:T(128)S(6)}', space=smem, size = 0x200, scoped, tag = 'scoped memory for tpu_custom_call.1']
  %s0 = inlined_call_operand.vmem [shape: f32[8,128], index: 0, kind: input, shape index: {}]
  %s1 = inlined_call_operand.vmem [shape: f32[32,8], index: 1, kind: input, shape index: {}]
  %s2 = inlined_call_operand.vmem [shape: f32[32,1], index: 2, kind: input, shape index: {}]
  %s3 = inlined_call_operand.vmem [shape: f32[32,1], index: 3, kind: input, shape index: {}]
  %s4 = inlined_call_operand.<no memory space> [shape: f32[1], index: 4, kind: input, shape index: {}]
  %s5 = inlined_call_operand.hbm [shape: f32[1,128], index: 5, kind: output, shape index: {}]
  %s6 = sld [smem:[#allocation0]]
  $region30: #{tpu_custom_call.1} parent=0
    _
  %s8 = ssub.s32 1, %s6
  %s9 = scalar_select 0, %s8, %s6
  %10 = sst [smem:[#allocation2]] %s4
  $region1: #{tpu_custom_call.1} parent=0
    #allocation3 [shape = 'u8[512]{0}', space=vmem, size = 0x400, scoped, tag = 'output window, operand 0, single buffered']
    #allocation4 [shape = 's32[1]{0}', space=sflag, size = 0x4, scoped, tag = 'scoped memory for tpu_custom_call.1']
    %11 = vsyncpa [#allocation4], 0
    // Predicated region
    $region2: #{tpu_custom_call.1} parent=1 // pred_check
      _
    $region3: #{tpu_custom_call.1} parent=1 // pred_check_branch
      %13 = sbr.rel (0) target = $region5
    $region4: #{tpu_custom_call.1} parent=1 // pred_region
      _
    $region5: #{tpu_custom_call.1} parent=1 // pred_fallthru
      _
    // Predicated region
    $region6: #{tpu_custom_call.1} parent=1 // pred_check
      _
    $region7: #{tpu_custom_call.1} parent=1 // pred_check_branch
      %15 = sbr.rel (0) target = $region9
    $region8: #{tpu_custom_call.1} parent=1 // pred_region
      _
    $region9: #{tpu_custom_call.1} parent=1 // pred_fallthru
      _
    // Predicated region
    $region10: #{tpu_custom_call.1} parent=1 // pred_check
      _
    $region11: #{tpu_custom_call.1} parent=1 // pred_check_branch
      %17 = sbr.rel (0) target = $region13
    $region12: #{tpu_custom_call.1} parent=1 // pred_region
      _
    $region13: #{tpu_custom_call.1} parent=1 // pred_fallthru
      _
    // Predicated region
    $region14: #{tpu_custom_call.1} parent=1 // pred_check
      _
    $region15: #{tpu_custom_call.1} parent=1 // pred_check_branch
      %19 = sbr.rel (0) target = $region17
    $region16: #{tpu_custom_call.1} parent=1 // pred_region
      _
    $region17: #{tpu_custom_call.1} parent=1 // pred_fallthru
      _
    // Predicated region
    $region18: #{tpu_custom_call.1} parent=1 // pred_check
      _
    $region19: #{tpu_custom_call.1} parent=1 // pred_check_branch
      %21 = sbr.rel (0) target = $region21
    $region20: #{tpu_custom_call.1} parent=1 // pred_region
      _
    $region21: #{tpu_custom_call.1} parent=1 // pred_fallthru
      _
    %v22 = vld [vmem:[%s1] sm:$0xff]
    %v23 = vld [vmem:[%s1 + $0x8] sm:$0xff]
    %v24 = vld [vmem:[%s1 + $0x10] sm:$0xff]
    %v25 = vld [vmem:[%s1 + $0x18] sm:$0xff]
    %v26 = vld [vmem:[%s0] sm:$0xff]
    %v27 = vld [vmem:[%s2] sm:$0xff]
    %v28 = vld [vmem:[%s2 + $0x8] sm:$0xff]
    %v29 = vld [vmem:[%s2 + $0x10] sm:$0xff]
    %v30 = vld [vmem:[%s2 + $0x18] sm:$0xff]
    %32 = vset.pattern.permute.xlu0 0
    %33 = vperm.xlu0 %32, %v27
    %v34 = vpop.permute.xlu0 %33
    %37 = vset.pattern.permute.xlu0 0
    %38 = vperm.xlu0 %37, %v28
    %v39 = vpop.permute.xlu0 %38
    %42 = vset.pattern.permute.xlu0 0
    %43 = vperm.xlu0 %42, %v29
    %v44 = vpop.permute.xlu0 %43
    %47 = vset.pattern.permute.xlu0 0
    %48 = vperm.xlu0 %47, %v30
    %v49 = vpop.permute.xlu0 %48
    %vm51 = vcmask 64512
    %v53 = vsel %vm51, %v22, 0
    %v56 = vsel %vm51, %v23, 0
    %v59 = vsel %vm51, %v24, 0
    %v62 = vsel %vm51, %v25, 0
    %64 = vmatpush.msra.mxu0 0.0
    %65 = vmatpush.msra.mxu0 0.0
    %66 = vmatpush.msra.mxu0 0.0
    %67 = vmatpush.msra.mxu0 0.0
    %68 = vmatpush.msra.mxu0 0.0
    %69 = vmatpush.msra.mxu0 0.0
    %70 = vmatpush.msra.mxu0 0.0
    %71 = vmatpush.msra.mxu0 0.0
    %72 = vmatpush.msra.mxu0 0.0
    %73 = vmatpush.msra.mxu0 0.0
    %74 = vmatpush.msra.mxu0 0.0
    %75 = vmatpush.msra.mxu0 0.0
    %76 = vmatpush.msra.mxu0 0.0
    %77 = vmatpush.msra.mxu0 0.0
    %78 = vmatpush.msra.mxu0 0.0
    %79 = vmatpush.msra.mxu0 %v26
    %80 = vmatmul.f32.gmra.mxu0 %v53
    %v81 = vpop.f32.mrf.mxu0
    %v82 = vadd.f32 %v34, %v81
    %83 = vmatmul.f32.gmra.mxu0 %v56
    %v84 = vpop.f32.mrf.mxu0
    %v85 = vadd.f32 %v39, %v84
    %86 = vmatmul.f32.gmra.mxu0 %v59
    %v87 = vpop.f32.mrf.mxu0
    %v88 = vadd.f32 %v44, %v87
    %89 = vmatmul.f32.gmra.mxu0 %v62
    %v90 = vpop.f32.mrf.mxu0
    %v91 = vadd.f32 %v49, %v90
    %92 = vdwg.mxu0
    %v93 = vmax.f32 %v82, 0.0
    %v94 = vmax.f32 %v85, 0.0
    %v95 = vmax.f32 %v88, 0.0
    %v96 = vmax.f32 %v91, 0.0
    %v97 = vld [vmem:[%s3] sm:$0xff]
    %v98 = vld [vmem:[%s3 + $0x8] sm:$0xff]
    %v99 = vld [vmem:[%s3 + $0x10] sm:$0xff]
    %v100 = vld [vmem:[%s3 + $0x18] sm:$0xff]
    %102 = vset.pattern.permute.xlu0 0
    %103 = vperm.xlu0 %102, %v97
    %v104 = vpop.permute.xlu0 %103
    %107 = vset.pattern.permute.xlu0 0
    %108 = vperm.xlu0 %107, %v98
    %v109 = vpop.permute.xlu0 %108
    %112 = vset.pattern.permute.xlu0 0
    %113 = vperm.xlu0 %112, %v99
    %v114 = vpop.permute.xlu0 %113
    %117 = vset.pattern.permute.xlu0 0
    %118 = vperm.xlu0 %117, %v100
    %v119 = vpop.permute.xlu0 %118
    %v121 = vmul.f32 %v104, %v93
    %v122 = vmul.f32 %v109, %v94
    %v123 = vmul.f32 %v114, %v95
    %v124 = vmul.f32 %v119, %v96
    %v125 = vadd.f32 %v121, %v122
    %v126 = vadd.f32 %v125, %v123
    %v127 = vadd.f32 %v126, %v124
    %v128 = vrot.slane %v127, 4
    %v129 = vadd.f32 %v127, %v128
    %v130 = vrot.slane %v129, 2
    %v131 = vadd.f32 %v129, %v130
    %v132 = vrot.slane %v131, 1
    %v133 = vadd.f32 %v131, %v132
    %s134 = sld [smem:[#allocation2]]
    %v135 = vstv %s134
    %v136 = vadd.f32 %v133, %v135
    %v137 = vxor.u32 %v136, 2147483648
    %v138 = vmul.f32 %v137, 1.442695
    %v139 = vpow.pop %v138
    %v140 = vadd.f32 %v139, 1.0
    %v141 = vrcp.pop %v140
    %v142 = vmul.f32 %v140, %v141
    %v143 = vsub.f32 1.0, %v142
    %v144 = vmul.f32 %v141, %v143
    %v145 = vadd.f32 %v141, %v144
    %vm146 = vweird.f32 %v140
    %vm147 = vweird.f32 %v141
    %vm148 = vmor %vm146, %vm147
    %v149 = vsel %vm148, %v141, %v145
    %v150 = vand.u32 2147483647, %v140
    %vm151 = vcmp.eq.f32.partialorder %v150, 8.507059e+37
    %v152 = vand.u32 %v140, 2147483648
    %v153 = vor.u32 1.1754944e-38, %v152
    %v154 = vsel %vm151, %v153, %v149
    %v155 = vmul.f32 1.0, %v154
    %156 = vst [vmem:[#allocation3] sm:$0x1] %v155
    // Predicated region
    $region22: #{tpu_custom_call.1} parent=1 // pred_check
      _
    $region23: #{tpu_custom_call.1} parent=1 // pred_check_branch
      %158 = sbr.rel (0) target = $region25
    $region24: #{tpu_custom_call.1} parent=1 // pred_region
      %160 = vsyncadd [#allocation4], 0
      %s162 = sshll.u32 [#allocation3], 4
      %s163 = int_to_ptr.vmem [resolvable:$true] %s162
      %s164 = sshll.u32 %s5, 4
      %s165 = int_to_ptr.hbm [resolvable:$true] %s164
      %167 = dma.vmem_to_hbm [thread:$0]  %s163, 16, %s165, [#allocation4]
    $region25: #{tpu_custom_call.1} parent=1 // pred_fallthru
      _
    // Predicated region
    $region26: #{tpu_custom_call.1} parent=1 // pred_check
      _
    $region27: #{tpu_custom_call.1} parent=1 // pred_check_branch
      %169 = sbr.rel (0) target = $region29
    $region28: #{tpu_custom_call.1} parent=1 // pred_region
      %171 = dma.done [#allocation4], 16
    $region29: #{tpu_custom_call.1} parent=1 // pred_fallthru
      _
    %172 = vsyncpa [#allocation4], 1

</llo_original>
